<compile_context>
chip_gen: v7x
topology: tpu7x:2x2x1
jax: 0.10.0
libtpu: 0.0.40
codegen_flags: <defaults>
</compile_context>

<pallas_src>
import jax
import jax.numpy as jnp
import numpy as np
from jax.experimental import pallas as pl
from jax.experimental.pallas import tpu as pltpu


def _round_up(x, m):
    return (x + m - 1) // m * m


# ----------------------------------------------------------------------------
# Kernel 1: tiled matmul + LeakyReLU(0.2) epilogue
#   out = lrelu(p @ w)      p:(Mp,Kp) bf16, w:(Kp,Np) bf16, out bf16
# ----------------------------------------------------------------------------
def _mm_lrelu_kernel(p_ref, w_ref, o_ref, acc_ref):
    @pl.when(pl.program_id(2) == 0)
    def _():
        acc_ref[...] = jnp.zeros_like(acc_ref)

    acc_ref[...] += jnp.dot(p_ref[...], w_ref[...],
                            preferred_element_type=jnp.float32)

    @pl.when(pl.program_id(2) == pl.num_programs(2) - 1)
    def _():
        y = acc_ref[...]
        o_ref[...] = jnp.maximum(y, 0.2 * y).astype(o_ref.dtype)


def _mm_lrelu(p, w, out_dtype, tm, tk, tn):
    Mp, Kp = p.shape
    _, Np = w.shape
    grid = (Mp // tm, Np // tn, Kp // tk)
    flops = 2 * Mp * Kp * Np
    bytes_accessed = (p.size * p.dtype.itemsize + w.size * w.dtype.itemsize
                      + Mp * Np * jnp.dtype(out_dtype).itemsize)
    return pl.pallas_call(
        _mm_lrelu_kernel,
        out_shape=jax.ShapeDtypeStruct((Mp, Np), out_dtype),
        grid_spec=pltpu.PrefetchScalarGridSpec(
            num_scalar_prefetch=0,
            grid=grid,
            in_specs=[
                pl.BlockSpec((tm, tk), lambda i, j, k: (i, k)),
                pl.BlockSpec((tk, tn), lambda i, j, k: (k, j)),
            ],
            out_specs=pl.BlockSpec((tm, tn), lambda i, j, k: (i, j)),
            scratch_shapes=[pltpu.VMEM((tm, tn), jnp.float32)],
        ),
        compiler_params=pltpu.CompilerParams(
            dimension_semantics=("parallel", "parallel", "arbitrary"),
            vmem_limit_bytes=32 * 1024 * 1024,
        ),
        cost_estimate=pl.CostEstimate(flops=flops, transcendentals=0,
                                      bytes_accessed=bytes_accessed),
    )(p, w)


# ----------------------------------------------------------------------------
# Kernel 2: tiled matmul + LeakyReLU + shortcut combine, all fused
#   out = (xs @ ws + b) + gamma * lrelu(p @ w)
# Identity shortcuts (fin == fout) are handled by passing ws = I, b = 0.
# ----------------------------------------------------------------------------
def _mm_lrelu_shortcut_kernel(p_ref, w_ref, xs_ref, ws_ref, b_ref, g_ref,
                              o_ref, acc_ref):
    k = pl.program_id(2)

    @pl.when(k == 0)
    def _():
        acc_ref[...] = jnp.zeros_like(acc_ref)

    acc_ref[...] += jnp.dot(p_ref[...], w_ref[...],
                            preferred_element_type=jnp.float32)

    @pl.when(k == pl.num_programs(2) - 1)
    def _():
        y = acc_ref[...]
        r = jnp.maximum(y, 0.2 * y)                        # LeakyReLU(0.2)
        s = jnp.dot(xs_ref[...], ws_ref[...],
                    preferred_element_type=jnp.float32) + b_ref[...]
        o_ref[...] = (s + g_ref[...] * r).astype(o_ref.dtype)


def _mm_lrelu_shortcut(p, w, xs, ws, b, gamma, tm, tk, tn):
    Mp, Kp = p.shape
    _, Np = w.shape
    Fp = xs.shape[1]
    grid = (Mp // tm, Np // tn, Kp // tk)
    flops = 2 * Mp * (Kp + Fp) * Np
    bytes_accessed = (p.size * p.dtype.itemsize + w.size * w.dtype.itemsize
                      + xs.size * xs.dtype.itemsize
                      + ws.size * ws.dtype.itemsize + Mp * Np * 4)
    return pl.pallas_call(
        _mm_lrelu_shortcut_kernel,
        out_shape=jax.ShapeDtypeStruct((Mp, Np), jnp.float32),
        grid_spec=pltpu.PrefetchScalarGridSpec(
            num_scalar_prefetch=0,
            grid=grid,
            in_specs=[
                pl.BlockSpec((tm, tk), lambda i, j, k: (i, k)),   # conv2 patches
                pl.BlockSpec((tk, tn), lambda i, j, k: (k, j)),   # conv2 weights
                pl.BlockSpec((tm, Fp), lambda i, j, k: (i, 0)),   # shortcut input
                pl.BlockSpec((Fp, tn), lambda i, j, k: (0, j)),   # 1x1 weights
                pl.BlockSpec((1, tn), lambda i, j, k: (0, j)),    # bias
                pl.BlockSpec((1, 1), lambda i, j, k: (0, 0)),     # gamma
            ],
            out_specs=pl.BlockSpec((tm, tn), lambda i, j, k: (i, j)),
            scratch_shapes=[pltpu.VMEM((tm, tn), jnp.float32)],
        ),
        compiler_params=pltpu.CompilerParams(
            dimension_semantics=("parallel", "parallel", "arbitrary"),
            vmem_limit_bytes=32 * 1024 * 1024,
        ),
        cost_estimate=pl.CostEstimate(flops=flops, transcendentals=0,
                                      bytes_accessed=bytes_accessed),
    )(p, w, xs, ws, b, gamma)


# ----------------------------------------------------------------------------
# Glue: im2col / pooling / weight reshapes (plain JAX)
# ----------------------------------------------------------------------------
def _im2col(x_nhwc, kh, kw, stride, pad):
    N, H, W, C = x_nhwc.shape
    xp = jnp.pad(x_nhwc, ((0, 0), (pad, pad), (pad, pad), (0, 0)))
    Ho = (H + 2 * pad - kh) // stride + 1
    Wo = (W + 2 * pad - kw) // stride + 1
    cols = []
    for i in range(kh):
        for j in range(kw):
            cols.append(xp[:, i::stride, j::stride, :][:, :Ho, :Wo, :])
    p = jnp.concatenate(cols, axis=-1)           # (N, Ho, Wo, kh*kw*C)
    return p.reshape(N * Ho * Wo, kh * kw * C), Ho, Wo


def _oihw_to_mat(w):
    # PyTorch (fout, fin, kh, kw) -> (kh*kw*fin, fout), matching im2col order.
    fout, fin, kh, kw = w.shape
    return jnp.transpose(w, (2, 3, 1, 0)).reshape(kh * kw * fin, fout)


def _pick_tiles(M, K, N):
    # Sized for the smallest-VMEM generation (v7x): a few hundred KiB per
    # buffer, so double-buffered inputs + f32 accumulator stay well under the
    # scoped-VMEM limit on v5e/v6e/v7x.
    tm = min(256, _round_up(M, 16))
    tk = min(512, _round_up(K, 128))
    tn = 128
    return tm, tk, tn, _round_up(M, tm), _round_up(K, tk), _round_up(N, tn)


def res_d_forward(x_nchw, params, downsample=True):
    """Forward of resD.  x_nchw: (N, fin, H, W) float32, returns NCHW f32."""
    w1, w2, ws, bs, gamma = (params["w1"], params["w2"], params["ws"],
                             params["bs"], params["gamma"])
    fout, fin = int(w1.shape[0]), int(w1.shape[1])
    learned_shortcut = (fin != fout)

    if not downsample:
        # The residual path always uses a stride-2 conv, so (as in PyTorch)
        # downsample=False would produce a shape mismatch in the final add.
        raise NotImplementedError("resD requires downsample=True")

    x = jnp.transpose(x_nchw, (0, 2, 3, 1)).astype(jnp.float32)   # NHWC
    N, H, W, _ = x.shape
    x_bf = x.astype(jnp.bfloat16)

    # ---- residual conv1: 4x4 / stride 2 / pad 1, LeakyReLU ------------------
    # TODO(synk): im2col patches are still materialized in HBM by XLA; a
    # further optimization is gathering the conv taps inside the kernel
    # (Element-indexed BlockSpecs / halo DMA) to remove the 16x/9x blow-up.
    p1, H2, W2 = _im2col(x_bf, 4, 4, 2, 1)
    M1, K1 = p1.shape
    w1m = _oihw_to_mat(w1).astype(jnp.bfloat16)
    tm, tk, tn, Mp, Kp, Np = _pick_tiles(M1, K1, fout)
    p1p = jnp.pad(p1, ((0, Mp - M1), (0, Kp - K1)))
    w1p = jnp.pad(w1m, ((0, Kp - K1), (0, Np - fout)))
    y1 = _mm_lrelu(p1p, w1p, jnp.bfloat16, tm, tk, tn)
    y1 = y1[:M1, :fout].reshape(N, H2, W2, fout)

    # ---- residual conv2 (3x3/s1/p1) + LeakyReLU, fused with shortcut --------
    p2, _, _ = _im2col(y1, 3, 3, 1, 1)
    M2, K2 = p2.shape                                     # M2 == M1
    w2m = _oihw_to_mat(w2).astype(jnp.bfloat16)

    # Shortcut: 2x2 avg-pool first (1x1 conv and avg-pool commute), so the
    # 1x1 conv matmul runs on the 4x smaller pooled tensor.
    xs = x.reshape(N, H // 2, 2, W // 2, 2, fin).mean(axis=(2, 4))
    xs_flat = xs.reshape(M2, fin)

    if learned_shortcut:
        ws_mat = _oihw_to_mat(ws).astype(jnp.float32)     # (fin, fout)
        bias = bs.reshape(1, fout).astype(jnp.float32)
    else:
        ws_mat = jnp.eye(fin, fout, dtype=jnp.float32)    # identity shortcut
        bias = jnp.zeros((1, fout), jnp.float32)

    tm2, tk2, tn2, Mp2, Kp2, Np2 = _pick_tiles(M2, K2, fout)
    Fp = _round_up(fin, 128)
    p2p = jnp.pad(p2, ((0, Mp2 - M2), (0, Kp2 - K2)))
    w2p = jnp.pad(w2m, ((0, Kp2 - K2), (0, Np2 - fout)))
    xsp = jnp.pad(xs_flat, ((0, Mp2 - M2), (0, Fp - fin))).astype(jnp.bfloat16)
    wsp = jnp.pad(ws_mat, ((0, Fp - fin), (0, Np2 - fout))).astype(jnp.bfloat16)
    bp = jnp.pad(bias, ((0, 0), (0, Np2 - fout)))
    gamma_r = gamma.reshape(1, 1).astype(jnp.float32)

    out = _mm_lrelu_shortcut(p2p, w2p, xsp, wsp, bp, gamma_r, tm2, tk2, tn2)
    out = out[:M2, :fout].reshape(N, H2, W2, fout)
    return jnp.transpose(out, (0, 3, 1, 2))               # back to NCHW


# ----------------------------------------------------------------------------
# Pure-JAX f32 reference (lax conv) for verification
# ----------------------------------------------------------------------------
def res_d_reference(x, params):
    w1, w2, ws, bs, gamma = (params["w1"], params["w2"], params["ws"],
                             params["bs"], params["gamma"])
    fout, fin = w1.shape[0], w1.shape[1]
    lrelu = lambda t: jnp.where(t > 0, t, 0.2 * t)
    conv = lambda t, w, s, p: jax.lax.conv_general_dilated(
        t, w, (s, s), ((p, p), (p, p)),
        dimension_numbers=("NCHW", "OIHW", "NCHW"))
    y = lrelu(conv(x, w1, 2, 1))
    y = lrelu(conv(y, w2, 1, 1))
    s = conv(x, ws, 1, 0) + bs[None, :, None, None] if fin != fout else x
    N, C, H, W = s.shape
    s = s.reshape(N, C, H // 2, 2, W // 2, 2).mean(axis=(3, 5))
    return s + gamma.reshape(()) * y


# ----------------------------------------------------------------------------
if __name__ == "__main__":
    N, fin, fout, H, W = 2, 4, 8, 16, 16

    key = jax.random.PRNGKey(0)
    k1, k2, k3, k4, kx = jax.random.split(key, 5)
    params = {
        "w1": 0.05 * jax.random.normal(k1, (fout, fin, 4, 4), jnp.float32),
        "w2": 0.05 * jax.random.normal(k2, (fout, fout, 3, 3), jnp.float32),
        "ws": 0.05 * jax.random.normal(k3, (fout, fin, 1, 1), jnp.float32),
        "bs": 0.05 * jax.random.normal(k4, (fout,), jnp.float32),
        # PyTorch inits gamma to zeros(1); use a nonzero value so the residual
        # branch is actually exercised by the check below.
        "gamma": jnp.array([0.5], jnp.float32),
    }
    x = jax.random.normal(kx, (N, fin, H, W), jnp.float32)

    out = jax.block_until_ready(res_d_forward(x, params, downsample=True))
    ref = jax.block_until_ready(res_d_reference(x, params))

    # bf16 matmul inputs (f32 accumulation) -> compare with bf16-level tolerance.
    np.testing.assert_allclose(np.asarray(out), np.asarray(ref),
                               rtol=3e-2, atol=3e-2)
    assert out.shape == (N, fout, H // 2, W // 2)
    print("KERNEL_OK")
</pallas_src>

<mosaic_0001>
module attributes {stable_mosaic.version = 11 : i64} {
  func.func @_mm_lrelu_kernel(%arg0: i32, %arg1: i32, %arg2: i32, %arg3: memref<128x128xbf16, #tpu.memory_space<vmem>>, %arg4: memref<128x128xbf16, #tpu.memory_space<vmem>>, %arg5: memref<128x128xbf16, #tpu.memory_space<vmem>>, %arg6: memref<128x128xf32, #tpu.memory_space<vmem>>) attributes {dimension_semantics = [#tpu.dimension_semantics<parallel>, #tpu.dimension_semantics<parallel>, #tpu.dimension_semantics<arbitrary>], iteration_bounds = array<i64: 1, 1, 1>, scalar_prefetch = 0 : i64, scratch_operands = 1 : i64, tpu.core_type = #tpu.core_type<tc>, window_params = [{transform_indices = @transform_0, window_bounds = array<i64: 128, 128>}, {transform_indices = @transform_1, window_bounds = array<i64: 128, 128>}, {transform_indices = @transform_2, window_bounds = array<i64: 128, 128>}]} {
    %c0_i32 = arith.constant 0 : i32
    %0 = arith.cmpi eq, %arg2, %c0_i32 : i32
    %1 = arith.extui %0 : i1 to i32
    %c0_i32_0 = arith.constant 0 : i32
    %2 = arith.cmpi ne, %1, %c0_i32_0 : i32
    scf.if %2 {
      %cst_10 = arith.constant 0.000000e+00 : f32
      %12 = vector.broadcast %cst_10 : f32 to vector<128x128xf32>
      %c0_11 = arith.constant 0 : index
      %c0_12 = arith.constant 0 : index
      %13 = vector.load %arg6[%c0_11, %c0_12] : memref<128x128xf32, #tpu.memory_space<vmem>>, vector<128x128xf32>
      tpu.vector_store %arg6[%c0_11, %c0_12], %12 {strides = array<i32>} : memref<128x128xf32, #tpu.memory_space<vmem>>, vector<128x128xf32>,
    } else {
    }
    %c0 = arith.constant 0 : index
    %c0_1 = arith.constant 0 : index
    %3 = vector.load %arg6[%c0, %c0_1] : memref<128x128xf32, #tpu.memory_space<vmem>>, vector<128x128xf32>
    %c0_2 = arith.constant 0 : index
    %c0_3 = arith.constant 0 : index
    %4 = vector.load %arg3[%c0_2, %c0_3] : memref<128x128xbf16, #tpu.memory_space<vmem>>, vector<128x128xbf16>
    %c0_4 = arith.constant 0 : index
    %c0_5 = arith.constant 0 : index
    %5 = vector.load %arg4[%c0_4, %c0_5] : memref<128x128xbf16, #tpu.memory_space<vmem>>, vector<128x128xbf16>
    %cst = arith.constant dense<0.000000e+00> : vector<128x128xf32>
    %6 = tpu.matmul %4, %5, %cst {dimension_numbers = #tpu.dot_dimension_numbers<[1], [0], [0], [1], [0, 0, 1, 1], [], []>} : vector<128x128xbf16>, vector<128x128xbf16>, vector<128x128xf32> -> vector<128x128xf32>
    %7 = arith.addf %3, %6 : vector<128x128xf32>
    %c0_6 = arith.constant 0 : index
    %c0_7 = arith.constant 0 : index
    %8 = vector.load %arg6[%c0_6, %c0_7] : memref<128x128xf32, #tpu.memory_space<vmem>>, vector<128x128xf32>
    tpu.vector_store %arg6[%c0_6, %c0_7], %7 {strides = array<i32>} : memref<128x128xf32, #tpu.memory_space<vmem>>, vector<128x128xf32>,
    %c0_i32_8 = arith.constant 0 : i32
    %9 = arith.cmpi eq, %arg2, %c0_i32_8 : i32
    %10 = arith.extui %9 : i1 to i32
    %c0_i32_9 = arith.constant 0 : i32
    %11 = arith.cmpi ne, %10, %c0_i32_9 : i32
    scf.if %11 {
      %c0_10 = arith.constant 0 : index
      %c0_11 = arith.constant 0 : index
      %12 = vector.load %arg6[%c0_10, %c0_11] : memref<128x128xf32, #tpu.memory_space<vmem>>, vector<128x128xf32>
      %cst_12 = arith.constant 2.000000e-01 : f32
      %13 = vector.broadcast %cst_12 : f32 to vector<128x128xf32>
      %14 = arith.mulf %13, %12 : vector<128x128xf32>
      %15 = arith.maximumf %12, %14 : vector<128x128xf32>
      %16 = arith.truncf %15 : vector<128x128xf32> to vector<128x128xbf16>
      %c0_13 = arith.constant 0 : index
      %c0_14 = arith.constant 0 : index
      %17 = vector.load %arg5[%c0_13, %c0_14] : memref<128x128xbf16, #tpu.memory_space<vmem>>, vector<128x128xbf16>
      tpu.vector_store %arg5[%c0_13, %c0_14], %16 {strides = array<i32>} : memref<128x128xbf16, #tpu.memory_space<vmem>>, vector<128x128xbf16>,
    } else {
    }
    return
  }
  func.func @transform_0(%arg0: i32, %arg1: i32, %arg2: i32) -> (i32, i32) {
    %c0_i32 = arith.constant 0 : i32
    return %arg0, %arg2 : i32, i32
  }
  func.func @transform_1(%arg0: i32, %arg1: i32, %arg2: i32) -> (i32, i32) {
    %c0_i32 = arith.constant 0 : i32
    return %arg2, %arg1 : i32, i32
  }
  func.func @transform_2(%arg0: i32, %arg1: i32, %arg2: i32) -> (i32, i32) {
    %c0_i32 = arith.constant 0 : i32
    return %arg0, %arg1 : i32, i32
  }
}

</mosaic_0001>

<llo_original>
// kernel: tpu_custom_call.1
$region0: #{tpu_custom_call.1}
  #allocation0 [shape = 'u32[]', space=smem, size = 0x4, offset = 0x4, fixed_abs, tag = 'smem constant byte address 0x4 - core index']
  #allocation1 [shape = 'u32[144,128]{1,0:T(1,128)}', space=vmem, size = 0x12000, scoped, tag = 'internal scratch']
  #allocation2 [shape = 'f32[128,128]{1,0:T(8,128)}', space=vmem, size = 0x10000, scoped, tag = 'scratch operand']
  %s0 = inlined_call_operand.hbm [shape: bf16[128,128], index: 0, kind: input, shape index: {}]
  %s1 = inlined_call_operand.hbm [shape: bf16[128,128], index: 1, kind: input, shape index: {}]
  %s2 = inlined_call_operand.hbm [shape: bf16[128,128], index: 2, kind: output, shape index: {}]
  %s3 = sld [smem:[#allocation0]]
  $region34: #{tpu_custom_call.1} parent=0
    _
  %s5 = ssub.s32 1, %s3
  %s6 = scalar_select 0, %s5, %s3
  $region1: #{tpu_custom_call.1} parent=0
    #allocation3 [shape = 'u8[32768]{0}', space=vmem, size = 0x8000, scoped, tag = 'input window, operand 0, single buffered']
    #allocation4 [shape = 's32[1]{0}', space=sflag, size = 0x4, scoped, tag = 'scoped memory for tpu_custom_call.1']
    #allocation5 [shape = 's32[1]{0}', space=sflag, size = 0x4, scoped, tag = 'scoped memory for tpu_custom_call.1']
    #allocation6 [shape = 'u8[32768]{0}', space=vmem, size = 0x8000, scoped, tag = 'input window, operand 1, single buffered']
    #allocation7 [shape = 's32[1]{0}', space=sflag, size = 0x4, scoped, tag = 'scoped memory for tpu_custom_call.1']
    #allocation8 [shape = 'u8[32768]{0}', space=vmem, size = 0x8000, scoped, tag = 'output window, operand 0, single buffered']
    %7 = vsyncpa [#allocation4], 0
    %8 = vsyncpa [#allocation7], 0
    %9 = vsyncpa [#allocation5], 0
    // Predicated region
    $region2: #{tpu_custom_call.1} parent=1 // pred_check
      _
    $region3: #{tpu_custom_call.1} parent=1 // pred_check_branch
      %11 = sbr.rel (0) target = $region5
    $region4: #{tpu_custom_call.1} parent=1 // pred_region
      %s13 = ssub.s32 1024, 1024
      %14 = vsyncadd [#allocation4], %s13
      %s15 = sshll.u32 [#allocation3], 4
      %s16 = int_to_ptr.vmem [resolvable:$true] %s15
      %21 = dma.hbm_to_vmem [thread:$0]  %s0, 1024, %s16, [#allocation4], 64, 64, 4
    $region5: #{tpu_custom_call.1} parent=1 // pred_fallthru
      _
    // Predicated region
    $region6: #{tpu_custom_call.1} parent=1 // pred_check
      _
    $region7: #{tpu_custom_call.1} parent=1 // pred_check_branch
      %23 = sbr.rel (0) target = $region9
    $region8: #{tpu_custom_call.1} parent=1 // pred_region
      %s25 = ssub.s32 1024, 1024
      %26 = vsyncadd [#allocation7], %s25
      %s27 = sshll.u32 [#allocation6], 4
      %s28 = int_to_ptr.vmem [resolvable:$true] %s27
      %33 = dma.hbm_to_vmem [thread:$0]  %s1, 1024, %s28, [#allocation7], 64, 64, 4
    $region9: #{tpu_custom_call.1} parent=1 // pred_fallthru
      _
    // Predicated region
    $region10: #{tpu_custom_call.1} parent=1 // pred_check
      _
    $region11: #{tpu_custom_call.1} parent=1 // pred_check_branch
      %35 = sbr.rel (0) target = $region13
    $region12: #{tpu_custom_call.1} parent=1 // pred_region
      %36 = dma.done [#allocation4], 1024
    $region13: #{tpu_custom_call.1} parent=1 // pred_fallthru
      _
    // Predicated region
    $region14: #{tpu_custom_call.1} parent=1 // pred_check
      _
    $region15: #{tpu_custom_call.1} parent=1 // pred_check_branch
      %38 = sbr.rel (0) target = $region17
    $region16: #{tpu_custom_call.1} parent=1 // pred_region
      %39 = dma.done [#allocation7], 1024
    $region17: #{tpu_custom_call.1} parent=1 // pred_fallthru
      _
    %p41 = scmp.eq.s32.totalorder 0, 0
    // Predicated region
    $region18: #{tpu_custom_call.1} parent=1 // pred_check
      %p42 = pneg %p41
    $region19: #{tpu_custom_call.1} parent=1 // pred_check_branch
      %44 = sbr.rel (%p42) target = $region21
    $region20: #{tpu_custom_call.1} parent=1 // pred_region
      %45 = vst [vmem:[#allocation2] sm:$0xff] 0.0
      %46 = vst [vmem:[#allocation2 + $0x8] sm:$0xff] 0.0
      %47 = vst [vmem:[#allocation2 + $0x10] sm:$0xff] 0.0
      %48 = vst [vmem:[#allocation2 + $0x18] sm:$0xff] 0.0
      %49 = vst [vmem:[#allocation2 + $0x20] sm:$0xff] 0.0
      %50 = vst [vmem:[#allocation2 + $0x28] sm:$0xff] 0.0
      %51 = vst [vmem:[#allocation2 + $0x30] sm:$0xff] 0.0
      %52 = vst [vmem:[#allocation2 + $0x38] sm:$0xff] 0.0
      %53 = vst [vmem:[#allocation2 + $0x40] sm:$0xff] 0.0
      %54 = vst [vmem:[#allocation2 + $0x48] sm:$0xff] 0.0
      %55 = vst [vmem:[#allocation2 + $0x50] sm:$0xff] 0.0
      %56 = vst [vmem:[#allocation2 + $0x58] sm:$0xff] 0.0
      %57 = vst [vmem:[#allocation2 + $0x60] sm:$0xff] 0.0
      %58 = vst [vmem:[#allocation2 + $0x68] sm:$0xff] 0.0
      %59 = vst [vmem:[#allocation2 + $0x70] sm:$0xff] 0.0
      %60 = vst [vmem:[#allocation2 + $0x78] sm:$0xff] 0.0
    $region21: #{tpu_custom_call.1} parent=1 // pred_fallthru
      _
    %v61 = vld [vmem:[#allocation2] sm:$0xff]
    %v62 = vld [vmem:[#allocation2 + $0x8] sm:$0xff]
    %v63 = vld [vmem:[#allocation2 + $0x10] sm:$0xff]
    %v64 = vld [vmem:[#allocation2 + $0x18] sm:$0xff]
    %v65 = vld [vmem:[#allocation2 + $0x20] sm:$0xff]
    %v66 = vld [vmem:[#allocation2 + $0x28] sm:$0xff]
    %v67 = vld [vmem:[#allocation2 + $0x30] sm:$0xff]
    %v68 = vld [vmem:[#allocation2 + $0x38] sm:$0xff]
    %v69 = vld [vmem:[#allocation2 + $0x40] sm:$0xff]
    %v70 = vld [vmem:[#allocation2 + $0x48] sm:$0xff]
    %v71 = vld [vmem:[#allocation2 + $0x50] sm:$0xff]
    %v72 = vld [vmem:[#allocation2 + $0x58] sm:$0xff]
    %v73 = vld [vmem:[#allocation2 + $0x60] sm:$0xff]
    %v74 = vld [vmem:[#allocation2 + $0x68] sm:$0xff]
    %v75 = vld [vmem:[#allocation2 + $0x70] sm:$0xff]
    %v76 = vld [vmem:[#allocation2 + $0x78] sm:$0xff]
    %v77 = vld [vmem:[#allocation3] sm:$0xf]
    %v78 = vld [vmem:[#allocation3 + $0x4] sm:$0xf]
    %v79 = vld [vmem:[#allocation3 + $0x8] sm:$0xf]
    %v80 = vld [vmem:[#allocation3 + $0xc] sm:$0xf]
    %v81 = vld [vmem:[#allocation3 + $0x10] sm:$0xf]
    %v82 = vld [vmem:[#allocation3 + $0x14] sm:$0xf]
    %v83 = vld [vmem:[#allocation3 + $0x18] sm:$0xf]
    %v84 = vld [vmem:[#allocation3 + $0x1c] sm:$0xf]
    %v85 = vld [vmem:[#allocation3 + $0x20] sm:$0xf]
    %v86 = vld [vmem:[#allocation3 + $0x24] sm:$0xf]
    %v87 = vld [vmem:[#allocation3 + $0x28] sm:$0xf]
    %v88 = vld [vmem:[#allocation3 + $0x2c] sm:$0xf]
    %v89 = vld [vmem:[#allocation3 + $0x30] sm:$0xf]
    %v90 = vld [vmem:[#allocation3 + $0x34] sm:$0xf]
    %v91 = vld [vmem:[#allocation3 + $0x38] sm:$0xf]
    %v92 = vld [vmem:[#allocation3 + $0x3c] sm:$0xf]
    %v93 = vld [vmem:[#allocation6] sm:$0xf]
    %v94 = vld [vmem:[#allocation6 + $0x4] sm:$0xf]
    %v95 = vld [vmem:[#allocation6 + $0x8] sm:$0xf]
    %v96 = vld [vmem:[#allocation6 + $0xc] sm:$0xf]
    %v97 = vld [vmem:[#allocation6 + $0x10] sm:$0xf]
    %v98 = vld [vmem:[#allocation6 + $0x14] sm:$0xf]
    %v99 = vld [vmem:[#allocation6 + $0x18] sm:$0xf]
    %v100 = vld [vmem:[#allocation6 + $0x1c] sm:$0xf]
    %v101 = vld [vmem:[#allocation6 + $0x20] sm:$0xf]
    %v102 = vld [vmem:[#allocation6 + $0x24] sm:$0xf]
    %v103 = vld [vmem:[#allocation6 + $0x28] sm:$0xf]
    %v104 = vld [vmem:[#allocation6 + $0x2c] sm:$0xf]
    %v105 = vld [vmem:[#allocation6 + $0x30] sm:$0xf]
    %v106 = vld [vmem:[#allocation6 + $0x34] sm:$0xf]
    %v107 = vld [vmem:[#allocation6 + $0x38] sm:$0xf]
    %v108 = vld [vmem:[#allocation6 + $0x3c] sm:$0xf]
    %v125 = vunpack.c.l.b16 %v77
    %v126 = vunpack.c.l.b16 %v78
    %v127 = vunpack.c.l.b16 %v79
    %v128 = vunpack.c.l.b16 %v80
    %v129 = vunpack.c.l.b16 %v81
    %v130 = vunpack.c.l.b16 %v82
    %v131 = vunpack.c.l.b16 %v83
    %v132 = vunpack.c.l.b16 %v84
    %v133 = vunpack.c.l.b16 %v85
    %v134 = vunpack.c.l.b16 %v86
    %v135 = vunpack.c.l.b16 %v87
    %v136 = vunpack.c.l.b16 %v88
    %v137 = vunpack.c.l.b16 %v89
    %v138 = vunpack.c.l.b16 %v90
    %v139 = vunpack.c.l.b16 %v91
    %v140 = vunpack.c.l.b16 %v92
    %v141 = vpack.c.b16 %v126, %v125
    %v142 = vpack.c.b16 %v128, %v127
    %v143 = vpack.c.b16 %v130, %v129
    %v144 = vpack.c.b16 %v132, %v131
    %v145 = vpack.c.b16 %v134, %v133
    %v146 = vpack.c.b16 %v136, %v135
    %v147 = vpack.c.b16 %v138, %v137
    %v148 = vpack.c.b16 %v140, %v139
    %v173 = vunpack.c.l.b16 %v93
    %v174 = vunpack.c.l.b16 %v94
    %v175 = vunpack.c.l.b16 %v95
    %v176 = vunpack.c.l.b16 %v96
    %v177 = vunpack.c.l.b16 %v97
    %v178 = vunpack.c.l.b16 %v98
    %v179 = vunpack.c.l.b16 %v99
    %v180 = vunpack.c.l.b16 %v100
    %v181 = vunpack.c.l.b16 %v101
    %v182 = vunpack.c.l.b16 %v102
    %v183 = vunpack.c.l.b16 %v103
    %v184 = vunpack.c.l.b16 %v104
    %v185 = vunpack.c.l.b16 %v105
    %v186 = vunpack.c.l.b16 %v106
    %v187 = vunpack.c.l.b16 %v107
    %v188 = vunpack.c.l.b16 %v108
    %v189 = vpack.c.b16 %v174, %v173
    %v190 = vpack.c.b16 %v176, %v175
    %v191 = vpack.c.b16 %v178, %v177
    %v192 = vpack.c.b16 %v180, %v179
    %v193 = vpack.c.b16 %v182, %v181
    %v194 = vpack.c.b16 %v184, %v183
    %v195 = vpack.c.b16 %v186, %v185
    %v196 = vpack.c.b16 %v188, %v187
    %205 = vmatprep.subr.bf16.mxu0 0
    %206 = vmatpush1.bf16.msra.mxu0 %v189
    %207 = vmatprep.subr.bf16.mxu0 0
    %208 = vmatpush1.bf16.msra.mxu0 %v190
    %209 = vmatprep.subr.bf16.mxu0 0
    %210 = vmatpush1.bf16.msra.mxu0 %v191
    %211 = vmatprep.subr.bf16.mxu0 0
    %212 = vmatpush1.bf16.msra.mxu0 %v192
    %213 = vmatprep.subr.bf16.mxu0 0
    %214 = vmatpush1.bf16.msra.mxu0 %v193
    %215 = vmatprep.subr.bf16.mxu0 0
    %216 = vmatpush1.bf16.msra.mxu0 %v194
    %217 = vmatprep.subr.bf16.mxu0 0
    %218 = vmatpush1.bf16.msra.mxu0 %v195
    %219 = vmatprep.subr.bf16.mxu0 0
    %220 = vmatpush1.bf16.msra.mxu0 %v196
    %221 = vmatprep.subr.bf16.mxu0 0
    %222 = vmatpush1.bf16.msra.mxu0 0
    %223 = vmatprep.subr.bf16.mxu0 0
    %224 = vmatpush1.bf16.msra.mxu0 0
    %225 = vmatprep.subr.bf16.mxu0 0
    %226 = vmatpush1.bf16.msra.mxu0 0
    %227 = vmatprep.subr.bf16.mxu0 0
    %228 = vmatpush1.bf16.msra.mxu0 0
    %229 = vmatprep.subr.bf16.mxu0 0
    %230 = vmatpush1.bf16.msra.mxu0 0
    %231 = vmatprep.subr.bf16.mxu0 0
    %232 = vmatpush1.bf16.msra.mxu0 0
    %233 = vmatprep.subr.bf16.mxu0 0
    %234 = vmatpush1.bf16.msra.mxu0 0
    %235 = vmatprep.subr.bf16.mxu0 0
    %236 = vmatpush1.bf16.msra.mxu0 0
    %237 = vmatprep.mubr.bf16.mxu0 0
    %238 = vmatmul.mubr.bf16.gmra.mrb[0].mxu0 %v141
    %v239 = vpop.f32.mrb[0].mxu0
    %v240 = vadd.f32 0.0, %v239
    %v241 = vpop.f32.mrb[0].mxu0
    %v242 = vpop.f32.mrb[0].mxu0
    %v243 = vadd.f32 0.0, %v242
    %v244 = vpop.f32.mrb[0].mxu0
    %245 = vmatprep.mubr.bf16.mxu0 0
    %246 = vmatmul.mubr.bf16.gmra.mrb[0].mxu0 %v142
    %v247 = vpop.f32.mrb[0].mxu0
    %v248 = vadd.f32 0.0, %v247
    %v249 = vpop.f32.mrb[0].mxu0
    %v250 = vpop.f32.mrb[0].mxu0
    %v251 = vadd.f32 0.0, %v250
    %v252 = vpop.f32.mrb[0].mxu0
    %253 = vmatprep.mubr.bf16.mxu0 0
    %254 = vmatmul.mubr.bf16.gmra.mrb[0].mxu0 %v143
    %v255 = vpop.f32.mrb[0].mxu0
    %v256 = vadd.f32 0.0, %v255
    %v257 = vpop.f32.mrb[0].mxu0
    %v258 = vpop.f32.mrb[0].mxu0
    %v259 = vadd.f32 0.0, %v258
    %v260 = vpop.f32.mrb[0].mxu0
    %261 = vmatprep.mubr.bf16.mxu0 0
    %262 = vmatmul.mubr.bf16.gmra.mrb[0].mxu0 %v144
    %v263 = vpop.f32.mrb[0].mxu0
    %v264 = vadd.f32 0.0, %v263
    %v265 = vpop.f32.mrb[0].mxu0
    %v266 = vpop.f32.mrb[0].mxu0
    %v267 = vadd.f32 0.0, %v266
    %v268 = vpop.f32.mrb[0].mxu0
    %269 = vmatprep.mubr.bf16.mxu0 0
    %270 = vmatmul.mubr.bf16.gmra.mrb[0].mxu0 %v145
    %v271 = vpop.f32.mrb[0].mxu0
    %v272 = vadd.f32 0.0, %v271
    %v273 = vpop.f32.mrb[0].mxu0
    %v274 = vpop.f32.mrb[0].mxu0
    %v275 = vadd.f32 0.0, %v274
    %v276 = vpop.f32.mrb[0].mxu0
    %277 = vmatprep.mubr.bf16.mxu0 0
    %278 = vmatmul.mubr.bf16.gmra.mrb[0].mxu0 %v146
    %v279 = vpop.f32.mrb[0].mxu0
    %v280 = vadd.f32 0.0, %v279
    %v281 = vpop.f32.mrb[0].mxu0
    %v282 = vpop.f32.mrb[0].mxu0
    %v283 = vadd.f32 0.0, %v282
    %v284 = vpop.f32.mrb[0].mxu0
    %285 = vmatprep.mubr.bf16.mxu0 0
    %286 = vmatmul.mubr.bf16.gmra.mrb[0].mxu0 %v147
    %v287 = vpop.f32.mrb[0].mxu0
    %v288 = vadd.f32 0.0, %v287
    %v289 = vpop.f32.mrb[0].mxu0
    %v290 = vpop.f32.mrb[0].mxu0
    %v291 = vadd.f32 0.0, %v290
    %v292 = vpop.f32.mrb[0].mxu0
    %293 = vmatprep.mubr.bf16.mxu0 0
    %294 = vmatmul.mubr.bf16.gmra.mrb[0].mxu0 %v148
    %v295 = vpop.f32.mrb[0].mxu0
    %v296 = vadd.f32 0.0, %v295
    %v297 = vpop.f32.mrb[0].mxu0
    %v298 = vpop.f32.mrb[0].mxu0
    %v299 = vadd.f32 0.0, %v298
    %v300 = vpop.f32.mrb[0].mxu0
    %301 = vdwg.mxu0
    %v302 = vadd.f32 %v61, %v240
    %v303 = vadd.f32 %v62, %v243
    %v304 = vadd.f32 %v63, %v248
    %v305 = vadd.f32 %v64, %v251
    %v306 = vadd.f32 %v65, %v256
    %v307 = vadd.f32 %v66, %v259
    %v308 = vadd.f32 %v67, %v264
    %v309 = vadd.f32 %v68, %v267
    %v310 = vadd.f32 %v69, %v272
    %v311 = vadd.f32 %v70, %v275
    %v312 = vadd.f32 %v71, %v280
    %v313 = vadd.f32 %v72, %v283
    %v314 = vadd.f32 %v73, %v288
    %v315 = vadd.f32 %v74, %v291
    %v316 = vadd.f32 %v75, %v296
    %v317 = vadd.f32 %v76, %v299
    %318 = vst [vmem:[#allocation2] sm:$0xff] %v302
    %319 = vst [vmem:[#allocation2 + $0x8] sm:$0xff] %v303
    %320 = vst [vmem:[#allocation2 + $0x10] sm:$0xff] %v304
    %321 = vst [vmem:[#allocation2 + $0x18] sm:$0xff] %v305
    %322 = vst [vmem:[#allocation2 + $0x20] sm:$0xff] %v306
    %323 = vst [vmem:[#allocation2 + $0x28] sm:$0xff] %v307
    %324 = vst [vmem:[#allocation2 + $0x30] sm:$0xff] %v308
    %325 = vst [vmem:[#allocation2 + $0x38] sm:$0xff] %v309
    %326 = vst [vmem:[#allocation2 + $0x40] sm:$0xff] %v310
    %327 = vst [vmem:[#allocation2 + $0x48] sm:$0xff] %v311
    %328 = vst [vmem:[#allocation2 + $0x50] sm:$0xff] %v312
    %329 = vst [vmem:[#allocation2 + $0x58] sm:$0xff] %v313
    %330 = vst [vmem:[#allocation2 + $0x60] sm:$0xff] %v314
    %331 = vst [vmem:[#allocation2 + $0x68] sm:$0xff] %v315
    %332 = vst [vmem:[#allocation2 + $0x70] sm:$0xff] %v316
    %333 = vst [vmem:[#allocation2 + $0x78] sm:$0xff] %v317
    // Predicated region
    $region22: #{tpu_custom_call.1} parent=1 // pred_check
      %p334 = pneg %p41
    $region23: #{tpu_custom_call.1} parent=1 // pred_check_branch
      %336 = sbr.rel (%p334) target = $region25
    $region24: #{tpu_custom_call.1} parent=1 // pred_region
      %v337 = vld [vmem:[#allocation2] sm:$0xff]
      %v338 = vld [vmem:[#allocation2 + $0x8] sm:$0xff]
      %v339 = vld [vmem:[#allocation2 + $0x10] sm:$0xff]
      %v340 = vld [vmem:[#allocation2 + $0x18] sm:$0xff]
      %v341 = vld [vmem:[#allocation2 + $0x20] sm:$0xff]
      %v342 = vld [vmem:[#allocation2 + $0x28] sm:$0xff]
      %v343 = vld [vmem:[#allocation2 + $0x30] sm:$0xff]
      %v344 = vld [vmem:[#allocation2 + $0x38] sm:$0xff]
      %v345 = vld [vmem:[#allocation2 + $0x40] sm:$0xff]
      %v346 = vld [vmem:[#allocation2 + $0x48] sm:$0xff]
      %v347 = vld [vmem:[#allocation2 + $0x50] sm:$0xff]
      %v348 = vld [vmem:[#allocation2 + $0x58] sm:$0xff]
      %v349 = vld [vmem:[#allocation2 + $0x60] sm:$0xff]
      %v350 = vld [vmem:[#allocation2 + $0x68] sm:$0xff]
      %v351 = vld [vmem:[#allocation2 + $0x70] sm:$0xff]
      %v352 = vld [vmem:[#allocation2 + $0x78] sm:$0xff]
      %v353 = vmul.f32 %v337, 0.2
      %v354 = vmul.f32 %v338, 0.2
      %v355 = vmul.f32 %v339, 0.2
      %v356 = vmul.f32 %v340, 0.2
      %v357 = vmul.f32 %v341, 0.2
      %v358 = vmul.f32 %v342, 0.2
      %v359 = vmul.f32 %v343, 0.2
      %v360 = vmul.f32 %v344, 0.2
      %v361 = vmul.f32 %v345, 0.2
      %v362 = vmul.f32 %v346, 0.2
      %v363 = vmul.f32 %v347, 0.2
      %v364 = vmul.f32 %v348, 0.2
      %v365 = vmul.f32 %v349, 0.2
      %v366 = vmul.f32 %v350, 0.2
      %v367 = vmul.f32 %v351, 0.2
      %v368 = vmul.f32 %v352, 0.2
      %v369 = vmax.f32 %v337, %v353
      %v370 = vmax.f32 %v338, %v354
      %v371 = vmax.f32 %v339, %v355
      %v372 = vmax.f32 %v340, %v356
      %v373 = vmax.f32 %v341, %v357
      %v374 = vmax.f32 %v342, %v358
      %v375 = vmax.f32 %v343, %v359
      %v376 = vmax.f32 %v344, %v360
      %v377 = vmax.f32 %v345, %v361
      %v378 = vmax.f32 %v346, %v362
      %v379 = vmax.f32 %v347, %v363
      %v380 = vmax.f32 %v348, %v364
      %v381 = vmax.f32 %v349, %v365
      %v382 = vmax.f32 %v350, %v366
      %v383 = vmax.f32 %v351, %v367
      %v384 = vmax.f32 %v352, %v368
      %v385 = vpack.c.bf16 %v370, %v369
      %v386 = vpack.c.bf16 %v372, %v371
      %v387 = vpack.c.bf16 %v374, %v373
      %v388 = vpack.c.bf16 %v376, %v375
      %v389 = vpack.c.bf16 %v378, %v377
      %v390 = vpack.c.bf16 %v380, %v379
      %v391 = vpack.c.bf16 %v382, %v381
      %v392 = vpack.c.bf16 %v384, %v383
      %v401 = vunpack.c.l.b16 %v385
      %v402 = vunpack.c.h.b16 %v385
      %v403 = vunpack.c.l.b16 %v386
      %v404 = vunpack.c.h.b16 %v386
      %v405 = vunpack.c.l.b16 %v387
      %v406 = vunpack.c.h.b16 %v387
      %v407 = vunpack.c.l.b16 %v388
      %v408 = vunpack.c.h.b16 %v388
      %v409 = vunpack.c.l.b16 %v389
      %v410 = vunpack.c.h.b16 %v389
      %v411 = vunpack.c.l.b16 %v390
      %v412 = vunpack.c.h.b16 %v390
      %v413 = vunpack.c.l.b16 %v391
      %v414 = vunpack.c.h.b16 %v391
      %v415 = vunpack.c.l.b16 %v392
      %v416 = vunpack.c.h.b16 %v392
      %v417 = vpack.c.b16 %v401, %v401
      %v418 = vpack.c.b16 %v402, %v402
      %v419 = vpack.c.b16 %v403, %v403
      %v420 = vpack.c.b16 %v404, %v404
      %v421 = vpack.c.b16 %v405, %v405
      %v422 = vpack.c.b16 %v406, %v406
      %v423 = vpack.c.b16 %v407, %v407
      %v424 = vpack.c.b16 %v408, %v408
      %v425 = vpack.c.b16 %v409, %v409
      %v426 = vpack.c.b16 %v410, %v410
      %v427 = vpack.c.b16 %v411, %v411
      %v428 = vpack.c.b16 %v412, %v412
      %v429 = vpack.c.b16 %v413, %v413
      %v430 = vpack.c.b16 %v414, %v414
      %v431 = vpack.c.b16 %v415, %v415
      %v432 = vpack.c.b16 %v416, %v416
      %449 = vst [vmem:[#allocation8] sm:$0xf] %v417
      %450 = vst [vmem:[#allocation8 + $0x4] sm:$0xf] %v418
      %451 = vst [vmem:[#allocation8 + $0x8] sm:$0xf] %v419
      %452 = vst [vmem:[#allocation8 + $0xc] sm:$0xf] %v420
      %453 = vst [vmem:[#allocation8 + $0x10] sm:$0xf] %v421
      %454 = vst [vmem:[#allocation8 + $0x14] sm:$0xf] %v422
      %455 = vst [vmem:[#allocation8 + $0x18] sm:$0xf] %v423
      %456 = vst [vmem:[#allocation8 + $0x1c] sm:$0xf] %v424
      %457 = vst [vmem:[#allocation8 + $0x20] sm:$0xf] %v425
      %458 = vst [vmem:[#allocation8 + $0x24] sm:$0xf] %v426
      %459 = vst [vmem:[#allocation8 + $0x28] sm:$0xf] %v427
      %460 = vst [vmem:[#allocation8 + $0x2c] sm:$0xf] %v428
      %461 = vst [vmem:[#allocation8 + $0x30] sm:$0xf] %v429
      %462 = vst [vmem:[#allocation8 + $0x34] sm:$0xf] %v430
      %463 = vst [vmem:[#allocation8 + $0x38] sm:$0xf] %v431
      %464 = vst [vmem:[#allocation8 + $0x3c] sm:$0xf] %v432
    $region25: #{tpu_custom_call.1} parent=1 // pred_fallthru
      _
    // Predicated region
    $region26: #{tpu_custom_call.1} parent=1 // pred_check
      _
    $region27: #{tpu_custom_call.1} parent=1 // pred_check_branch
      %466 = sbr.rel (0) target = $region29
    $region28: #{tpu_custom_call.1} parent=1 // pred_region
      %s468 = ssub.s32 1024, 1024
      %469 = vsyncadd [#allocation5], %s468
      %s470 = sshll.u32 [#allocation8], 4
      %s471 = int_to_ptr.vmem [resolvable:$true] %s470
      %476 = dma.vmem_to_hbm [thread:$0]  %s471, 1024, %s2, [#allocation5], 64, 64, 4
    $region29: #{tpu_custom_call.1} parent=1 // pred_fallthru
      _
    // Predicated region
    $region30: #{tpu_custom_call.1} parent=1 // pred_check
      _
    $region31: #{tpu_custom_call.1} parent=1 // pred_check_branch
      %478 = sbr.rel (0) target = $region33
    $region32: #{tpu_custom_call.1} parent=1 // pred_region
      %479 = dma.done [#allocation5], 1024
    $region33: #{tpu_custom_call.1} parent=1 // pred_fallthru
      _
    %480 = vsyncpa [#allocation4], 1
    %481 = vsyncpa [#allocation7], 1
    %482 = vsyncpa [#allocation5], 1

</llo_original>
